<compile_context>
chip_gen: v5e
topology: v5e:2x2
jax: 0.10.0
libtpu: 0.0.40
codegen_flags: <defaults>
</compile_context>

<pallas_src>
import jax
import jax.numpy as jnp
from jax.experimental import pallas as pl
from jax.experimental.pallas import tpu as pltpu


def _round_up(x, m):
    return (x + m - 1) // m * m


def _unfold(x, k, stride, padding):
    """torch.nn.Unfold equivalent (dilation=1). x: (B,C,H,W) -> ((B, C*k*k, L), H_out, W_out)."""
    B, C, H, W = x.shape
    xp = jnp.pad(x, ((0, 0), (0, 0), (padding, padding), (padding, padding)))
    Hp, Wp = H + 2 * padding, W + 2 * padding
    H_out = (Hp - (k - 1) - 1) // stride + 1
    W_out = (Wp - (k - 1) - 1) // stride + 1
    taps = []
    for i in range(k):
        for j in range(k):
            sl = xp[:, :,
                    i: i + stride * (H_out - 1) + 1: stride,
                    j: j + stride * (W_out - 1) + 1: stride]
            taps.append(sl)  # (B, C, H_out, W_out)
    p = jnp.stack(taps, axis=2)  # (B, C, k*k, H_out, W_out); tap index = kh*k + kw
    return p.reshape(B, C * k * k, H_out * W_out), H_out, W_out


def _max_unpool_mask_count(feat, indices, size):
    """Per-spatial-location count of channels whose max-unpooled value is nonzero.

    feat/indices: (B, C, Hp, Wp); size: (Hs, Ws). Returns (B, 1, Hs, Ws) float.
    """
    B, C, Hp, Wp = feat.shape
    Hs, Ws = size
    b_idx = jnp.arange(B)[:, None, None]
    c_idx = jnp.arange(C)[None, :, None]
    flat = jnp.zeros((B, C, Hs * Ws), feat.dtype)
    unpooled = flat.at[b_idx, c_idx, indices.reshape(B, C, -1)].set(
        feat.reshape(B, C, -1))
    mask = (unpooled.reshape(B, C, Hs, Ws) != 0).astype(feat.dtype)
    return mask.sum(axis=1, keepdims=True)  # (B, 1, Hs, Ws)


def _xyz_pool_kernel(xyz_ref, w_ref, o_ref):
    # xyz_ref: (1, 3, K2, TL)  im2col of xyz for this (batch, L-tile)
    # w_ref  : (1, K2, TL)     per-tap selection frequency
    # o_ref  : (1, 3, TL)      lane-dense weighted xyz (channel-first, NCHW-ready)
    prod = xyz_ref[0] * w_ref[...]                    # (3, K2, TL)  VPU
    o_ref[0] = jnp.sum(prod, axis=1).astype(o_ref.dtype)   # sublane reduce -> (3, TL)


def xyz_pool_max_forward(xyz, feat, indices, size, *, kernel_size,
                         stride=None, padding=0):
    """xyz: (B,3,Hs,Ws); feat,indices: (B,C,width,length); size: (Hs,Ws).

    Returns (B, 3, width, length) — matches xyz_pool(type='max').forward.
    """
    if stride is None:
        stride = kernel_size
    B, C, width, length = feat.shape
    K2 = kernel_size * kernel_size

    # --- per-tap selection frequency (channel sum commutes with unfold) ---
    cnt = _max_unpool_mask_count(feat, indices, size)           # (B,1,Hs,Ws)
    w_unf, H_out, W_out = _unfold(cnt, kernel_size, stride, padding)  # (B,K2,L)
    L = H_out * W_out
    assert (H_out, W_out) == (width, length), "unfold grid must match pooled feat"
    weight = (w_unf / C).astype(jnp.float32)                    # (B, K2, L)

    # --- im2col of xyz, tap-separated layout (B, 3, K2, L) ---
    xyz_unf, _, _ = _unfold(xyz, kernel_size, stride, padding)  # (B, 3*K2, L)
    xyz_p = xyz_unf.reshape(B, 3, K2, L).astype(jnp.float32)

    # --- tile L lane-dense (multiple of 128), pad ragged tail with zeros ---
    TL = min(512, _round_up(L, 128))
    L_pad = _round_up(L, TL)
    if L_pad != L:
        xyz_p = jnp.pad(xyz_p, ((0, 0), (0, 0), (0, 0), (0, L_pad - L)))
        weight = jnp.pad(weight, ((0, 0), (0, 0), (0, L_pad - L)))

    out = pl.pallas_call(
        _xyz_pool_kernel,
        out_shape=jax.ShapeDtypeStruct((B, 3, L_pad), jnp.float32),
        grid_spec=pltpu.PrefetchScalarGridSpec(
            num_scalar_prefetch=0,
            grid=(B, L_pad // TL),
            in_specs=[
                pl.BlockSpec((1, 3, K2, TL), lambda b, l: (b, 0, 0, l)),
                pl.BlockSpec((1, K2, TL), lambda b, l: (b, 0, l)),
            ],
            out_specs=pl.BlockSpec((1, 3, TL), lambda b, l: (b, 0, l)),
        ),
        compiler_params=pltpu.CompilerParams(
            dimension_semantics=("parallel", "parallel")),
    )(xyz_p, weight)

    # (B, 3, L) is already channel-first; just fold L back to (width, length).
    return out[:, :, :L].reshape(B, 3, width, length).astype(xyz.dtype)


def _reference(xyz, feat, indices, size, *, kernel_size, stride, padding):
    """Plain-JAX transcription of the exact PyTorch pipeline (type='max')."""
    B, C, width, length = feat.shape
    Hs, Ws = size
    K2 = kernel_size * kernel_size
    b_idx = jnp.arange(B)[:, None, None]
    c_idx = jnp.arange(C)[None, :, None]
    unpooled = jnp.zeros((B, C, Hs * Ws), feat.dtype).at[
        b_idx, c_idx, indices.reshape(B, C, -1)].set(feat.reshape(B, C, -1))
    mask = (unpooled.reshape(B, C, Hs, Ws) != 0).astype(feat.dtype)
    mask_unf, H_out, W_out = _unfold(mask, kernel_size, stride, padding)
    L = H_out * W_out
    weight = mask_unf.reshape(B, C, K2, L).sum(1) / C          # (B, K2, L)
    xyz_unf, _, _ = _unfold(xyz, kernel_size, stride, padding)
    xyz_ = xyz_unf.reshape(B, 3, K2, L).transpose(0, 2, 3, 1)  # (B, K2, L, 3)
    pooled = jnp.sum(xyz_ * weight[..., None], axis=1)         # (B, L, 3)
    return pooled.reshape(B, width, length, 3).transpose(0, 3, 1, 2)


if __name__ == "__main__":
    # Small shapes consistent with the module: a 2x2/stride-2 max pool of a
    # (B, C, 16, 16) feature map, with xyz coords at the pre-pool resolution.
    B, C, Hs, Ws = 2, 4, 16, 16
    K, stride, padding = 2, 2, 0
    Hp, Wp = Hs // stride, Ws // stride

    key = jax.random.PRNGKey(0)
    k_x, k_xyz = jax.random.split(key, 2)

    x_pre = jax.random.normal(k_x, (B, C, Hs, Ws), jnp.float32)   # pre-pool features
    xyz = jax.random.normal(k_xyz, (B, 3, Hs, Ws), jnp.float32)

    # Emulate torch max_pool2d(x_pre, K, stride, return_indices=True):
    xw = x_pre.reshape(B, C, Hp, K, Wp, K).transpose(0, 1, 2, 4, 3, 5)
    xw = xw.reshape(B, C, Hp, Wp, K * K)
    feat = xw.max(axis=-1)                                        # (B, C, Hp, Wp)
    arg = jnp.argmax(xw, axis=-1)                                 # window-local idx
    dh, dw = arg // K, arg % K
    ii = jnp.arange(Hp)[None, None, :, None]
    jj = jnp.arange(Wp)[None, None, None, :]
    indices = ((stride * ii + dh) * Ws + (stride * jj + dw)).astype(jnp.int32)
    size = (Hs, Ws)

    out = xyz_pool_max_forward(xyz, feat, indices, size,
                               kernel_size=K, stride=stride, padding=padding)
    out = jax.block_until_ready(out)

    ref = _reference(xyz, feat, indices, size,
                     kernel_size=K, stride=stride, padding=padding)
    assert out.shape == (B, 3, Hp, Wp)
    assert jnp.allclose(out, ref, atol=1e-5, rtol=1e-5)

    print("KERNEL_OK")
</pallas_src>

<mosaic_0001>
module attributes {stable_mosaic.version = 11 : i64} {
  func.func @_xyz_pool_kernel(%arg0: i32, %arg1: i32, %arg2: memref<1x3x4x128xf32, #tpu.memory_space<vmem>>, %arg3: memref<1x4x128xf32, #tpu.memory_space<vmem>>, %arg4: memref<1x3x128xf32, #tpu.memory_space<vmem>>) attributes {dimension_semantics = [#tpu.dimension_semantics<parallel>, #tpu.dimension_semantics<parallel>], iteration_bounds = array<i64: 2, 1>, scalar_prefetch = 0 : i64, scratch_operands = 0 : i64, tpu.core_type = #tpu.core_type<tc>, window_params = [{transform_indices = @transform_0, window_bounds = array<i64: 1, 3, 4, 128>}, {transform_indices = @transform_1, window_bounds = array<i64: 1, 4, 128>}, {transform_indices = @transform_2, window_bounds = array<i64: 1, 3, 128>}]} {
    %c0 = arith.constant 0 : index
    %c0_0 = arith.constant 0 : index
    %c0_1 = arith.constant 0 : index
    %c0_2 = arith.constant 0 : index
    %0 = vector.load %arg2[%c0, %c0_0, %c0_1, %c0_2] : memref<1x3x4x128xf32, #tpu.memory_space<vmem>>, vector<1x3x4x128xf32>
    %1 = vector.shape_cast %0 : vector<1x3x4x128xf32> to vector<3x4x128xf32>
    %c0_3 = arith.constant 0 : index
    %c0_4 = arith.constant 0 : index
    %c0_5 = arith.constant 0 : index
    %2 = vector.load %arg3[%c0_3, %c0_4, %c0_5] : memref<1x4x128xf32, #tpu.memory_space<vmem>>, vector<1x4x128xf32>
    %3 = vector.broadcast %2 : vector<1x4x128xf32> to vector<3x4x128xf32>
    %4 = arith.mulf %1, %3 : vector<3x4x128xf32>
    %cst = arith.constant dense<0.000000e+00> : vector<3x128xf32>
    %5 = vector.multi_reduction <add>, %4, %cst [1] : vector<3x4x128xf32> to vector<3x128xf32>
    %c0_6 = arith.constant 0 : index
    %c0_7 = arith.constant 0 : index
    %c0_8 = arith.constant 0 : index
    %6 = vector.load %arg4[%c0_6, %c0_7, %c0_8] : memref<1x3x128xf32, #tpu.memory_space<vmem>>, vector<1x3x128xf32>
    %7 = vector.shape_cast %6 : vector<1x3x128xf32> to vector<3x128xf32>
    %8 = vector.shape_cast %5 : vector<3x128xf32> to vector<1x3x128xf32>
    tpu.vector_store %arg4[%c0_6, %c0_7, %c0_8], %8 {strides = array<i32>} : memref<1x3x128xf32, #tpu.memory_space<vmem>>, vector<1x3x128xf32>,
    return
  }
  func.func @transform_0(%arg0: i32, %arg1: i32) -> (i32, i32, i32, i32) {
    %c0_i32 = arith.constant 0 : i32
    %c0_i32_0 = arith.constant 0 : i32
    %c0_i32_1 = arith.constant 0 : i32
    return %arg0, %c0_i32, %c0_i32_0, %arg1 : i32, i32, i32, i32
  }
  func.func @transform_1(%arg0: i32, %arg1: i32) -> (i32, i32, i32) {
    %c0_i32 = arith.constant 0 : i32
    %c0_i32_0 = arith.constant 0 : i32
    return %arg0, %c0_i32, %arg1 : i32, i32, i32
  }
  func.func @transform_2(%arg0: i32, %arg1: i32) -> (i32, i32, i32) {
    %c0_i32 = arith.constant 0 : i32
    %c0_i32_0 = arith.constant 0 : i32
    return %arg0, %c0_i32, %arg1 : i32, i32, i32
  }
}

</mosaic_0001>

<llo_original>
// kernel: tpu_custom_call.1
$region0: #{tpu_custom_call.1}
  #allocation0 [shape = 'u32[]', space=smem, size = 0x4, offset = 0x4, fixed_abs, tag = 'smem constant byte address 0x4 - core index']
  #allocation1 [shape = 'u32[72,128]{1,0:T(1,128)}', space=vmem, size = 0x9000, scoped, tag = 'internal scratch']
  %s0 = inlined_call_operand.hbm [shape: f32[2,3,4,128], index: 0, kind: input, shape index: {}]
  %s1 = inlined_call_operand.hbm [shape: f32[2,4,128], index: 1, kind: input, shape index: {}]
  %s2 = inlined_call_operand.vmem [shape: f32[2,3,128], index: 2, kind: output, shape index: {}]
  %s3 = sld [smem:[#allocation0]]
  $region49: #{tpu_custom_call.1} parent=0
    _
  %s5 = ssub.s32 1, %s3
  %s6 = scalar_select 0, %s5, %s3
  $region1: #{tpu_custom_call.1} parent=0
    #allocation2 [shape = 'u8[12288]{0}', space=vmem, size = 0x3000, scoped, tag = 'input window, operand 0']
    #allocation3 [shape = 's32[2]{0}', space=sflag, size = 0x8, scoped, tag = 'scoped memory for tpu_custom_call.1']
    #allocation4 [shape = 'u8[4096]{0}', space=vmem, size = 0x1000, scoped, tag = 'input window, operand 1']
    #allocation5 [shape = 's32[2]{0}', space=sflag, size = 0x8, scoped, tag = 'scoped memory for tpu_custom_call.1']
    %7 = vsyncpa [#allocation3], 0
    %s8 = scalar_lea.sflag [#allocation3], 1
    %9 = vsyncpa %s8, 0
    %10 = vsyncpa [#allocation5], 0
    %s11 = scalar_lea.sflag [#allocation5], 1
    %12 = vsyncpa %s11, 0
    loop: start=0, step=1, limit=4
    $region2: #{tpu_custom_call.1} parent=1 // loop_pre_header
      _
    $region3: #{tpu_custom_call.1} parent=1 // loop_header
      %s14 = sphi 0, %s18
      %p15 = scmp.ge.s32.totalorder %s14, 4
      %s21 = sphi 0, %s33
      %s22 = sphi 0, %s29
      %s23 = sphi 0, %s21
      %s24 = sphi 0, %s22
      %s25 = sphi 0, %s23
      %s26 = sphi 0, %s24
      %s38 = sphi 0, %s40
      %s41 = sphi 0, %s38
      %s42 = sphi 0, %s41
      %s58 = sphi 0, %s42
      %s66 = sphi 0, %s68
      %s69 = sphi 0, %s66
      %s70 = sphi 0, %s69
      %s86 = sphi 0, %s70
      %s94 = sphi 0, %s96
      %s97 = sphi 0, %s94
      %s98 = sphi 0, %s97
      %s114 = sphi 0, %s98
    $region4: #{tpu_custom_call.1} parent=1 // loop_header_branch
      %17 = sbr.rel (%p15) target = $region8
    $region5: #{tpu_custom_call.1} parent=1 // loop_body
      %s19 = ssub.s32 %s14, 1
      %s20 = ssub.s32 %s14, 2
      %s27 = sadd.s32 1, %s22
      %p28 = scmp.ge.s32.totalorder %s27, 1
      %s29 = scalar_select %p28, 0, %s27
      %s30 = sadd.s32 1, %s21
      %s31 = scalar_select %p28, %s30, %s21
      %p32 = scmp.ge.s32.totalorder %s31, 2
      %s33 = scalar_select %p32, 0, %s31
      %s34 = ssub.s32 %s21, %s33
      %s35 = ssub.s32 %s22, %s29
      %s36 = sor.u32 %s34, %s35
      %p37 = scmp.eq.s32.totalorder %s36, 0
      %s39 = sadd.s32 %s38, 1
      %s40 = scalar_select %p37, %s38, %s39
      %p43 = pneg %p37
      %p44 = scmp.eq.s32.totalorder %s14, 1
      %p45 = por %p43, %p44
      %p46 = scmp.ne.s32.totalorder %s38, %s41
      %p47 = scmp.eq.s32.totalorder %s14, 0
      %p48 = por %p46, %p47
      %p49 = scmp.ne.s32.totalorder %s38, %s41
      %p50 = scmp.eq.s32.totalorder %s19, 1
      %p51 = por %p49, %p50
      %p52 = scmp.ne.s32.totalorder %s41, %s42
      %p53 = scmp.eq.s32.totalorder %s19, 0
      %p54 = por %p52, %p53
      %p55 = scmp.ne.s32.totalorder %s41, %s42
      %p56 = scmp.eq.s32.totalorder %s20, 1
      %p57 = por %p55, %p56
      %p59 = scmp.ne.s32.totalorder %s42, %s58
      %p60 = scmp.eq.s32.totalorder %s20, 0
      %p61 = por %p59, %p60
      %s62 = ssub.s32 %s21, %s33
      %s63 = ssub.s32 %s22, %s29
      %s64 = sor.u32 %s62, %s63
      %p65 = scmp.eq.s32.totalorder %s64, 0
      %s67 = sadd.s32 %s66, 1
      %s68 = scalar_select %p65, %s66, %s67
      %p71 = pneg %p65
      %p72 = scmp.eq.s32.totalorder %s14, 1
      %p73 = por %p71, %p72
      %p74 = scmp.ne.s32.totalorder %s66, %s69
      %p75 = scmp.eq.s32.totalorder %s14, 0
      %p76 = por %p74, %p75
      %p77 = scmp.ne.s32.totalorder %s66, %s69
      %p78 = scmp.eq.s32.totalorder %s19, 1
      %p79 = por %p77, %p78
      %p80 = scmp.ne.s32.totalorder %s69, %s70
      %p81 = scmp.eq.s32.totalorder %s19, 0
      %p82 = por %p80, %p81
      %p83 = scmp.ne.s32.totalorder %s69, %s70
      %p84 = scmp.eq.s32.totalorder %s20, 1
      %p85 = por %p83, %p84
      %p87 = scmp.ne.s32.totalorder %s70, %s86
      %p88 = scmp.eq.s32.totalorder %s20, 0
      %p89 = por %p87, %p88
      %s90 = ssub.s32 %s21, %s33
      %s91 = ssub.s32 %s22, %s29
      %s92 = sor.u32 %s90, %s91
      %p93 = scmp.eq.s32.totalorder %s92, 0
      %s95 = sadd.s32 %s94, 1
      %s96 = scalar_select %p93, %s94, %s95
      %p99 = pneg %p93
      %p100 = scmp.eq.s32.totalorder %s14, 1
      %p101 = por %p99, %p100
      %p102 = scmp.ne.s32.totalorder %s94, %s97
      %p103 = scmp.eq.s32.totalorder %s14, 0
      %p104 = por %p102, %p103
      %p105 = scmp.ne.s32.totalorder %s94, %s97
      %p106 = scmp.eq.s32.totalorder %s19, 1
      %p107 = por %p105, %p106
      %p108 = scmp.ne.s32.totalorder %s97, %s98
      %p109 = scmp.eq.s32.totalorder %s19, 0
      %p110 = por %p108, %p109
      %p111 = scmp.ne.s32.totalorder %s97, %s98
      %p112 = scmp.eq.s32.totalorder %s20, 1
      %p113 = por %p111, %p112
      %p115 = scmp.ne.s32.totalorder %s98, %s114
      %p116 = scmp.eq.s32.totalorder %s20, 0
      %p117 = por %p115, %p116
      %p118 = scmp.le.s32.totalorder 1, %s14
      %p119 = scmp.lt.s32.totalorder %s14, 3
      %p120 = pnand %p118, %p119
      %p121 = pneg %p120
      // Predicated region
      $region9: #{tpu_custom_call.1} parent=5 // pred_check
        _
      $region10: #{tpu_custom_call.1} parent=5 // pred_check_branch
        %123 = sbr.rel (%p120) target = $region12
      $region11: #{tpu_custom_call.1} parent=5 // pred_region
        %s124 = ssub.s32 %s14, 1
      $region12: #{tpu_custom_call.1} parent=5 // pred_fallthru
        _
      %p125 = scmp.lt.s32.totalorder %s14, 2
      // Predicated region
      $region13: #{tpu_custom_call.1} parent=5 // pred_check
        %p126 = pneg %p125
      $region14: #{tpu_custom_call.1} parent=5 // pred_check_branch
        %128 = sbr.rel (%p126) target = $region16
      $region15: #{tpu_custom_call.1} parent=5 // pred_region
        // Predicated region
        $region17: #{tpu_custom_call.1} parent=15 // pred_check
          %p129 = pneg %p48
        $region18: #{tpu_custom_call.1} parent=15 // pred_check_branch
          %131 = sbr.rel (%p129) target = $region20
        $region19: #{tpu_custom_call.1} parent=15 // pred_region
          %s132 = sand.u32 %s38, 1
          %s133 = scalar_lea.sflag [#allocation3], %s132
          %s134 = sand.u32 %s38, 1
          %s135 = smul.addr %s134, 12
          %s136 = scalar_lea.vmem [#allocation2], %s135
          %138 = vsyncadd %s133, 0
          %s139 = smul.addr %s21, 3
          %s140 = sadd.s32 %s22, %s139
          %s141 = smul.addr %s140, 4
          %s142 = scalar_lea.hbm %s0, %s141
          %s143 = sshll.u32 %s142, 4
          %s144 = int_to_ptr.hbm [resolvable:$true] %s143
          %s145 = sshll.u32 %s136, 4
          %s146 = int_to_ptr.vmem [resolvable:$true] %s145
          %151 = dma.hbm_to_vmem [thread:$0]  %s144, 192, %s146, %s133, 64, 64, 4
        $region20: #{tpu_custom_call.1} parent=15 // pred_fallthru
          _
        // Predicated region
        $region21: #{tpu_custom_call.1} parent=15 // pred_check
          %p152 = pneg %p76
        $region22: #{tpu_custom_call.1} parent=15 // pred_check_branch
          %154 = sbr.rel (%p152) target = $region24
        $region23: #{tpu_custom_call.1} parent=15 // pred_region
          %s155 = sand.u32 %s66, 1
          %s156 = scalar_lea.sflag [#allocation5], %s155
          %s157 = sand.u32 %s66, 1
          %s158 = smul.addr %s157, 4
          %s159 = scalar_lea.vmem [#allocation4], %s158
          %161 = vsyncadd %s156, 0
          %s162 = sadd.s32 %s22, %s21
          %s163 = smul.addr %s162, 4
          %s164 = scalar_lea.hbm %s1, %s163
          %s166 = sshll.u32 %s164, 4
          %s167 = int_to_ptr.hbm [resolvable:$true] %s166
          %s168 = sshll.u32 %s159, 4
          %s169 = int_to_ptr.vmem [resolvable:$true] %s168
          %171 = dma.hbm_to_vmem [thread:$0]  %s167, 64, %s169, %s156
        $region24: #{tpu_custom_call.1} parent=15 // pred_fallthru
          _
      $region16: #{tpu_custom_call.1} parent=5 // pred_fallthru
        _
      %p172 = scmp.le.s32.totalorder 1, %s14
      %p173 = scmp.lt.s32.totalorder %s14, 3
      %p174 = pnand %p172, %p173
      %p175 = pneg %p174
      // Predicated region
      $region25: #{tpu_custom_call.1} parent=5 // pred_check
        _
      $region26: #{tpu_custom_call.1} parent=5 // pred_check_branch
        %177 = sbr.rel (%p174) target = $region28
      $region27: #{tpu_custom_call.1} parent=5 // pred_region
        %s178 = ssub.s32 %s14, 1
        %s179 = sand.u32 %s41, 1
        %s180 = scalar_lea.sflag [#allocation3], %s179
        %s181 = sand.u32 %s41, 1
        %s182 = smul.addr %s181, 12
        %s183 = scalar_lea.vmem [#allocation2], %s182
        // Predicated region
        $region29: #{tpu_custom_call.1} parent=27 // pred_check
          %p184 = pneg %p54
        $region30: #{tpu_custom_call.1} parent=27 // pred_check_branch
          %186 = sbr.rel (%p184) target = $region32
        $region31: #{tpu_custom_call.1} parent=27 // pred_region
          %188 = dma.done %s180, 192
        $region32: #{tpu_custom_call.1} parent=27 // pred_fallthru
          _
        %s189 = sand.u32 %s69, 1
        %s190 = scalar_lea.sflag [#allocation5], %s189
        %s191 = sand.u32 %s69, 1
        %s192 = smul.addr %s191, 4
        %s193 = scalar_lea.vmem [#allocation4], %s192
        // Predicated region
        $region33: #{tpu_custom_call.1} parent=27 // pred_check
          %p194 = pneg %p82
        $region34: #{tpu_custom_call.1} parent=27 // pred_check_branch
          %196 = sbr.rel (%p194) target = $region36
        $region35: #{tpu_custom_call.1} parent=27 // pred_region
          %198 = dma.done %s190, 64
        $region36: #{tpu_custom_call.1} parent=27 // pred_fallthru
          _
        %s199 = sand.u32 %s41, 1
        %s200 = scalar_lea.sflag [#allocation3], %s199
        %s201 = sand.u32 %s41, 1
        %s202 = smul.addr %s201, 12
        %s203 = scalar_lea.vmem [#allocation2], %s202
        %p204 = pneg %p54
        %p205 = pneg %p51
        %s206 = sand.u32 %s69, 1
        %s207 = scalar_lea.sflag [#allocation5], %s206
        %s208 = sand.u32 %s69, 1
        %s209 = smul.addr %s208, 4
        %s210 = scalar_lea.vmem [#allocation4], %s209
        %p211 = pneg %p82
        %p212 = pneg %p79
        %p213 = pneg %p110
        %p214 = pneg %p107
        %p215 = scmp.lt.s32.totalorder %s23, 1
        %s216 = scalar_select %p215, %s23, 1
        %p217 = scmp.lt.s32.totalorder %s24, 0
        %s218 = scalar_select %p217, %s24, 0
        %s219 = sadd.s32 %s218, %s216
        %s220 = smul.addr %s219, 4
        %s221 = scalar_lea.vmem %s2, %s220
        %p222 = scmp.lt.s32.totalorder %s23, 1
        %s223 = scalar_select %p222, %s23, 1
        %p224 = scmp.lt.s32.totalorder %s24, 0
        %s225 = scalar_select %p224, %s24, 0
        %s226 = sadd.s32 %s225, %s223
        %s227 = smul.addr %s226, 4
        %s228 = scalar_lea.vmem %s2, %s227
        %v229 = vld [vmem:[%s183] sm:$0xf]
        %v230 = vld [vmem:[%s183 + $0x4] sm:$0xf]
        %v231 = vld [vmem:[%s183 + $0x8] sm:$0xf]
        %v232 = vld [vmem:[%s193] sm:$0xf]
        %v233 = vmul.f32 %v229, %v232
        %v234 = vmul.f32 %v230, %v232
        %v235 = vmul.f32 %v231, %v232
        %vm236 = vcmask 1043456
        %v237 = vsel %vm236, %v233, 0.0
        %v238 = vrot.slane %v237, 4
        %v239 = vadd.f32 %v237, %v238
        %v240 = vrot.slane %v239, 2
        %v241 = vadd.f32 %v239, %v240
        %v242 = vrot.slane %v241, 1
        %v243 = vadd.f32 %v241, %v242
        %v244 = vsel %vm236, %v234, 0.0
        %v245 = vrot.slane %v244, 4
        %v246 = vadd.f32 %v244, %v245
        %v247 = vrot.slane %v246, 2
        %v248 = vadd.f32 %v246, %v247
        %v249 = vrot.slane %v248, 1
        %v250 = vadd.f32 %v248, %v249
        %v251 = vsel %vm236, %v235, 0.0
        %v252 = vrot.slane %v251, 4
        %v253 = vadd.f32 %v251, %v252
        %v254 = vrot.slane %v253, 2
        %v255 = vadd.f32 %v253, %v254
        %v256 = vrot.slane %v255, 1
        %v257 = vadd.f32 %v255, %v256
        %vm261 = vcmask 1041409
        %v262 = vsel %vm261, %v250, %v243
        %vm263 = vcmask 1042434
        %v264 = vsel %vm263, %v257, %v262
        %266 = vst [vmem:[%s228] sm:$0x7] %v264
        %p267 = scmp.lt.s32.totalorder %s23, 1
        %s268 = scalar_select %p267, %s23, 1
        %p269 = scmp.lt.s32.totalorder %s24, 0
        %s270 = scalar_select %p269, %s24, 0
        %s271 = sadd.s32 %s270, %s268
        %s272 = smul.addr %s271, 4
        %s273 = scalar_lea.vmem %s2, %s272
        // Predicated region
        $region37: #{tpu_custom_call.1} parent=27 // pred_check
          %p274 = pneg %p107
        $region38: #{tpu_custom_call.1} parent=27 // pred_check_branch
          %276 = sbr.rel (%p274) target = $region40
        $region39: #{tpu_custom_call.1} parent=27 // pred_region
          _
        $region40: #{tpu_custom_call.1} parent=27 // pred_fallthru
          _
      $region28: #{tpu_custom_call.1} parent=5 // pred_fallthru
        _
      %p277 = scmp.le.s32.totalorder 2, %s14
      // Predicated region
      $region41: #{tpu_custom_call.1} parent=5 // pred_check
        %p278 = pneg %p277
      $region42: #{tpu_custom_call.1} parent=5 // pred_check_branch
        %280 = sbr.rel (%p278) target = $region44
      $region43: #{tpu_custom_call.1} parent=5 // pred_region
        %s281 = ssub.s32 %s14, 2
        // Predicated region
        $region45: #{tpu_custom_call.1} parent=43 // pred_check
          %p282 = pneg %p113
        $region46: #{tpu_custom_call.1} parent=43 // pred_check_branch
          %284 = sbr.rel (%p282) target = $region48
        $region47: #{tpu_custom_call.1} parent=43 // pred_region
          %p285 = scmp.lt.s32.totalorder %s25, 1
          %s286 = scalar_select %p285, %s25, 1
          %p287 = scmp.lt.s32.totalorder %s26, 0
          %s288 = scalar_select %p287, %s26, 0
          %s289 = sadd.s32 %s288, %s286
          %s290 = smul.addr %s289, 4
          %s291 = scalar_lea.vmem %s2, %s290
        $region48: #{tpu_custom_call.1} parent=43 // pred_fallthru
          _
      $region44: #{tpu_custom_call.1} parent=5 // pred_fallthru
        _
    $region6: #{tpu_custom_call.1} parent=1 // loop_footer
      %s18 = sadd.s32 1, %s14
    $region7: #{tpu_custom_call.1} parent=1 // loop_footer_branch
      %13 = sbr.rel target = $region3
    $region8: #{tpu_custom_call.1} parent=1 // loop_exit
      _
    %292 = vsyncpa [#allocation3], 1
    %s293 = scalar_lea.sflag [#allocation3], 1
    %294 = vsyncpa %s293, 1
    %295 = vsyncpa [#allocation5], 1
    %s296 = scalar_lea.sflag [#allocation5], 1
    %297 = vsyncpa %s296, 1

</llo_original>
